<compile_context>
chip_gen: v5e
topology: v5e:2x2
jax: 0.10.0
libtpu: 0.0.40
codegen_flags: <defaults>
</compile_context>

<pallas_src>
import jax
import jax.numpy as jnp
from jax.experimental import pallas as pl
from jax.experimental.pallas import tpu as pltpu


def _round_up(x: int, m: int) -> int:
    return ((x + m - 1) // m) * m


# ---------------------------------------------------------------------------
# Path A: small vocabulary -> embedding table resident in VMEM, gather done as
# a one-hot matmul on the MXU.  No per-row DMAs, no scalar prefetch.
# ---------------------------------------------------------------------------
def _genres_vmem_kernel(idx_ref, table_ref, w_ref, b_ref, out_ref):
    # idx_ref  : VMEM (block_b, 1) int32
    # table_ref: VMEM (item_size, embd_dim)   resident across the grid
    # w_ref    : VMEM (embd_dim, g_pad)       resident
    # b_ref    : VMEM (1, g_pad) float32      resident
    # out_ref  : VMEM (block_b, g_pad)
    idx = idx_ref[...]                                        # (block_b, 1)
    block_b = idx.shape[0]
    item_size = table_ref.shape[0]
    # One-hot gather on the MXU: row r of `onehot @ table` is exactly table[idx[r]].
    eq = jax.lax.broadcasted_iota(jnp.int32, (block_b, item_size), 1) == idx
    onehot = jnp.where(eq, 1.0, 0.0).astype(table_ref.dtype)  # (block_b, item_size)
    emb = jnp.dot(onehot, table_ref[...],
                  preferred_element_type=jnp.float32)         # exact bf16 rows in f32
    # Dropout is identity at inference.
    # TODO(synk): training-mode dropout (masking + 1/(1-p) scaling) not implemented.
    acc = jnp.dot(emb.astype(w_ref.dtype), w_ref[...],
                  preferred_element_type=jnp.float32)
    acc = acc + b_ref[...]
    out_ref[...] = jnp.maximum(acc, 0.0).astype(out_ref.dtype)


# ---------------------------------------------------------------------------
# Path B: large vocabulary -> table stays in HBM (memory_space=pl.ANY), rows
# gathered by manual DMA.  The gather is double-buffered across grid steps so
# block i+1's rows are in flight while block i is computed.
# ---------------------------------------------------------------------------
def _genres_hbm_kernel(idx_ref, table_hbm, w_ref, b_ref, out_ref, emb_ref, sem_ref):
    # idx_ref  : SMEM (b_pad,) int32              (scalar prefetch)
    # table_hbm: HBM  (item_size, embd_dim)
    # w_ref    : VMEM (embd_dim, g_pad)           resident
    # b_ref    : VMEM (1, g_pad) float32          resident
    # out_ref  : VMEM (block_b, g_pad)
    # emb_ref  : VMEM (2, block_b, embd_dim)      double-buffered gather target
    # sem_ref  : DMA  (2,)                        one semaphore per buffer slot
    bi = pl.program_id(0)
    nb = pl.num_programs(0)
    block_b = out_ref.shape[0]
    slot = jax.lax.rem(bi, 2)

    def start_rows(block, s):
        base = block * block_b

        @pl.loop(0, block_b)
        def _(r):
            row = idx_ref[base + r]
            pltpu.make_async_copy(
                table_hbm.at[pl.ds(row, 1), :],
                emb_ref.at[s, pl.ds(r, 1), :],
                sem_ref.at[s],
            ).start()

    def wait_rows(s):
        @pl.loop(0, block_b)
        def _(r):
            # Dummy src of identical shape: wait only needs dst / sem / size.
            pltpu.make_async_copy(
                table_hbm.at[pl.ds(0, 1), :],
                emb_ref.at[s, pl.ds(r, 1), :],
                sem_ref.at[s],
            ).wait()

    @pl.when(bi == 0)
    def _():
        start_rows(bi, slot)            # prime the first block (only step with exposed gather)

    @pl.when(bi + 1 < nb)
    def _():
        start_rows(bi + 1, 1 - slot)    # prefetch next block behind this step's compute

    wait_rows(slot)

    # Dropout is identity at inference.
    emb = emb_ref[slot]                 # (block_b, embd_dim)
    acc = jnp.dot(emb, w_ref[...], preferred_element_type=jnp.float32)
    acc = acc + b_ref[...]
    out_ref[...] = jnp.maximum(acc, 0.0).astype(out_ref.dtype)


class GenresPallas:
    """Eval-mode Genres forward (embedding lookup -> linear -> ReLU) on TPU."""

    def __init__(self, embd_table, w, b, *, block_b=256, out_dtype=jnp.bfloat16,
                 small_table_bytes=4 << 20):
        # embd_table: (item_size, embd_dim)   nn.Embedding weight (row i = embedding of item i)
        # w         : (embd_dim, genre_size)  nn.Linear weight (transposed vs PyTorch (out, in))
        # b         : (genre_size,)           nn.Linear bias
        self.item_size, self.embd_dim = (int(s) for s in embd_table.shape)
        self.genre_size = int(w.shape[1])
        self.out_dtype = out_dtype
        self.block_b_req = max(16, (int(block_b) // 16) * 16)

        # Lane-dense output: pad genre dim to a multiple of 128 (minimal pad, no over-padding).
        self.g_pad = _round_up(self.genre_size, 128)

        table_bytes = self.item_size * self.embd_dim * jnp.dtype(embd_table.dtype).itemsize
        self.use_vmem_table = table_bytes <= small_table_bytes

        self.table = embd_table
        # Pad W / bias ONCE at init (hoisted out of the per-call hot path).
        self.w_p = (jnp.zeros((self.embd_dim, self.g_pad), dtype=w.dtype)
                    .at[:, :self.genre_size].set(w))
        self.b_p = (jnp.zeros((1, self.g_pad), dtype=jnp.float32)
                    .at[0, :self.genre_size].set(b.astype(jnp.float32)))

    def _pick_block_b(self, B):
        b16 = _round_up(max(int(B), 1), 16)
        block_b = min(self.block_b_req, b16)
        # Keep >= 2 grid steps when the batch allows it so dimension_semantics=("parallel",)
        # can spread blocks over both TensorCores on v7x (VMEM-table path only; the HBM path
        # is sequential because of the cross-step gather prefetch).
        if self.use_vmem_table and b16 >= 32 and block_b >= b16:
            block_b = _round_up(b16 // 2, 16)
        return block_b

    def __call__(self, item_idx, *, trim=True):
        B = int(item_idx.shape[0])
        block_b = self._pick_block_b(B)
        nb = pl.cdiv(B, block_b)
        b_pad = nb * block_b

        # TODO(synk): PyTorch nn.Embedding raises on out-of-range ids; here they are clamped.
        idx = jnp.clip(item_idx.astype(jnp.int32), 0, self.item_size - 1)
        if b_pad != B:
            idx = jnp.zeros((b_pad,), jnp.int32).at[:B].set(idx)

        out_isz = jnp.dtype(self.out_dtype).itemsize
        w_isz = jnp.dtype(self.w_p.dtype).itemsize
        tbl_isz = jnp.dtype(self.table.dtype).itemsize

        if self.use_vmem_table:
            cost = pl.CostEstimate(
                flops=2 * b_pad * self.item_size * self.embd_dim
                      + 2 * b_pad * self.embd_dim * self.g_pad,
                transcendentals=0,
                bytes_accessed=(b_pad * 4
                                + self.item_size * self.embd_dim * tbl_isz
                                + self.embd_dim * self.g_pad * w_isz
                                + self.g_pad * 4
                                + b_pad * self.g_pad * out_isz))
            out = pl.pallas_call(
                _genres_vmem_kernel,
                out_shape=jax.ShapeDtypeStruct((b_pad, self.g_pad), self.out_dtype),
                grid=(nb,),
                in_specs=[
                    pl.BlockSpec((block_b, 1), lambda i: (i, 0)),                         # indices
                    pl.BlockSpec((self.item_size, self.embd_dim), lambda i: (0, 0)),      # table
                    pl.BlockSpec((self.embd_dim, self.g_pad), lambda i: (0, 0)),          # W
                    pl.BlockSpec((1, self.g_pad), lambda i: (0, 0)),                      # bias
                ],
                out_specs=pl.BlockSpec((block_b, self.g_pad), lambda i: (i, 0)),
                compiler_params=pltpu.CompilerParams(
                    dimension_semantics=("parallel",)),
                cost_estimate=cost,
            )(idx.reshape(b_pad, 1), self.table, self.w_p, self.b_p)
        else:
            cost = pl.CostEstimate(
                flops=2 * b_pad * self.embd_dim * self.g_pad,
                transcendentals=0,
                bytes_accessed=(b_pad * self.embd_dim * tbl_isz
                                + self.embd_dim * self.g_pad * w_isz
                                + self.g_pad * 4
                                + b_pad * self.g_pad * out_isz))
            out = pl.pallas_call(
                _genres_hbm_kernel,
                out_shape=jax.ShapeDtypeStruct((b_pad, self.g_pad), self.out_dtype),
                grid_spec=pltpu.PrefetchScalarGridSpec(
                    num_scalar_prefetch=1,
                    grid=(nb,),
                    in_specs=[
                        pl.BlockSpec(memory_space=pl.ANY),                                # table in HBM
                        pl.BlockSpec((self.embd_dim, self.g_pad), lambda i, idx: (0, 0)),  # W resident
                        pl.BlockSpec((1, self.g_pad), lambda i, idx: (0, 0)),              # bias
                    ],
                    out_specs=pl.BlockSpec((block_b, self.g_pad), lambda i, idx: (i, 0)),
                    scratch_shapes=[
                        pltpu.VMEM((2, block_b, self.embd_dim), self.table.dtype),        # gather dbuf
                        pltpu.SemaphoreType.DMA((2,)),
                    ],
                ),
                # Sequential grid: block i+1's gather is issued while block i is computed.
                compiler_params=pltpu.CompilerParams(
                    dimension_semantics=("arbitrary",)),
                cost_estimate=cost,
            )(idx, self.table, self.w_p, self.b_p)

        if trim:
            # Consumers that can work on the padded (b_pad, g_pad) slab can pass trim=False
            # and skip this slice copy.
            out = out[:B, :self.genre_size]
        return out


if __name__ == "__main__":
    # Small, module-consistent shapes.
    item_size = 512    # vocabulary of items
    genre_size = 16    # number of genres
    embd_dim = 128     # embedding dimension
    batch = 16

    key = jax.random.PRNGKey(0)
    k_emb, k_w, k_b, k_idx = jax.random.split(key, 4)

    # nn.Embedding default init: N(0, 1); stored bf16 for MXU / DMA efficiency.
    embd_table = jax.random.normal(k_emb, (item_size, embd_dim)).astype(jnp.bfloat16)
    # nn.Linear default init: U(-1/sqrt(fan_in), 1/sqrt(fan_in)); stored transposed (in, out).
    bound = 1.0 / (embd_dim ** 0.5)
    w = jax.random.uniform(k_w, (embd_dim, genre_size), minval=-bound,
                           maxval=bound).astype(jnp.bfloat16)
    b = jax.random.uniform(k_b, (genre_size,), minval=-bound, maxval=bound,
                           dtype=jnp.float32)
    item_idx = jax.random.randint(k_idx, (batch,), 0, item_size, dtype=jnp.int32)

    # Pure-JAX f32 reference (eval-mode dropout = identity), same bf16 inputs upcast to f32.
    ref = jnp.maximum(
        embd_table[item_idx].astype(jnp.float32) @ w.astype(jnp.float32) + b, 0.0)

    # Path A (default at these shapes: 512x128 bf16 table = 128 KiB -> VMEM resident).
    genres_small = GenresPallas(embd_table, w, b, block_b=256)
    assert genres_small.use_vmem_table
    out_small = jax.block_until_ready(genres_small(item_idx))
    assert out_small.shape == (batch, genre_size)
    assert jnp.allclose(out_small.astype(jnp.float32), ref, atol=2e-2, rtol=2e-2), (
        "small-path max abs err = %f"
        % float(jnp.max(jnp.abs(out_small.astype(jnp.float32) - ref))))

    # Path B (forced, to exercise the large-vocabulary HBM-gather path).
    genres_large = GenresPallas(embd_table, w, b, block_b=256, small_table_bytes=0)
    assert not genres_large.use_vmem_table
    out_large = jax.block_until_ready(genres_large(item_idx))
    assert out_large.shape == (batch, genre_size)
    assert jnp.allclose(out_large.astype(jnp.float32), ref, atol=2e-2, rtol=2e-2), (
        "hbm-path max abs err = %f"
        % float(jnp.max(jnp.abs(out_large.astype(jnp.float32) - ref))))

    print("KERNEL_OK")
</pallas_src>

<mosaic_0001>
module attributes {stable_mosaic.version = 11 : i64} {
  func.func @_genres_vmem_kernel(%arg0: i32, %arg1: memref<16x1xi32, #tpu.memory_space<vmem>>, %arg2: memref<512x128xbf16, #tpu.memory_space<vmem>>, %arg3: memref<128x128xbf16, #tpu.memory_space<vmem>>, %arg4: memref<1x128xf32, #tpu.memory_space<vmem>>, %arg5: memref<16x128xbf16, #tpu.memory_space<vmem>>) attributes {dimension_semantics = [#tpu.dimension_semantics<parallel>], iteration_bounds = array<i64: 1>, scalar_prefetch = 0 : i64, scratch_operands = 0 : i64, tpu.core_type = #tpu.core_type<tc>, window_params = [{transform_indices = @transform_0, window_bounds = array<i64: 16, 1>}, {pipeline_mode = #tpu.pipeline_mode<synchronous>, transform_indices = @transform_1, window_bounds = array<i64: 512, 128>}, {pipeline_mode = #tpu.pipeline_mode<synchronous>, transform_indices = @transform_2, window_bounds = array<i64: 128, 128>}, {pipeline_mode = #tpu.pipeline_mode<synchronous>, transform_indices = @transform_3, window_bounds = array<i64: 1, 128>}, {transform_indices = @transform_4, window_bounds = array<i64: 16, 128>}]} {
    %c0 = arith.constant 0 : index
    %c0_0 = arith.constant 0 : index
    %0 = vector.load %arg1[%c0, %c0_0] : memref<16x1xi32, #tpu.memory_space<vmem>>, vector<16x1xi32>
    %1 = tpu.iota {dimensions = array<i32: 1>} : vector<16x512xi32>
    %2 = vector.broadcast %0 : vector<16x1xi32> to vector<16x512xi32>
    %3 = arith.cmpi eq, %1, %2 : vector<16x512xi32>
    %cst = arith.constant 1.000000e+00 : f32
    %cst_1 = arith.constant 0.000000e+00 : f32
    %4 = vector.broadcast %cst : f32 to vector<16x512xf32>
    %5 = vector.broadcast %cst_1 : f32 to vector<16x512xf32>
    %6 = arith.select %3, %4, %5 : vector<16x512xi1>, vector<16x512xf32>
    %7 = arith.truncf %6 : vector<16x512xf32> to vector<16x512xbf16>
    %c0_2 = arith.constant 0 : index
    %c0_3 = arith.constant 0 : index
    %8 = vector.load %arg2[%c0_2, %c0_3] : memref<512x128xbf16, #tpu.memory_space<vmem>>, vector<512x128xbf16>
    %cst_4 = arith.constant dense<0.000000e+00> : vector<16x128xf32>
    %9 = tpu.matmul %7, %8, %cst_4 {dimension_numbers = #tpu.dot_dimension_numbers<[1], [0], [0], [1], [0, 0, 1, 1], [], []>} : vector<16x512xbf16>, vector<512x128xbf16>, vector<16x128xf32> -> vector<16x128xf32>
    %10 = arith.truncf %9 : vector<16x128xf32> to vector<16x128xbf16>
    %c0_5 = arith.constant 0 : index
    %c0_6 = arith.constant 0 : index
    %11 = vector.load %arg3[%c0_5, %c0_6] : memref<128x128xbf16, #tpu.memory_space<vmem>>, vector<128x128xbf16>
    %cst_7 = arith.constant dense<0.000000e+00> : vector<16x128xf32>
    %12 = tpu.matmul %10, %11, %cst_7 {dimension_numbers = #tpu.dot_dimension_numbers<[1], [0], [0], [1], [0, 0, 1, 1], [], []>} : vector<16x128xbf16>, vector<128x128xbf16>, vector<16x128xf32> -> vector<16x128xf32>
    %c0_8 = arith.constant 0 : index
    %c0_9 = arith.constant 0 : index
    %13 = vector.load %arg4[%c0_8, %c0_9] : memref<1x128xf32, #tpu.memory_space<vmem>>, vector<1x128xf32>
    %14 = vector.broadcast %13 : vector<1x128xf32> to vector<16x128xf32>
    %15 = arith.addf %12, %14 : vector<16x128xf32>
    %cst_10 = arith.constant 0.000000e+00 : f32
    %16 = vector.broadcast %cst_10 : f32 to vector<16x128xf32>
    %17 = arith.maximumf %15, %16 : vector<16x128xf32>
    %18 = arith.truncf %17 : vector<16x128xf32> to vector<16x128xbf16>
    %c0_11 = arith.constant 0 : index
    %c0_12 = arith.constant 0 : index
    %19 = vector.load %arg5[%c0_11, %c0_12] : memref<16x128xbf16, #tpu.memory_space<vmem>>, vector<16x128xbf16>
    tpu.vector_store %arg5[%c0_11, %c0_12], %18 {strides = array<i32>} : memref<16x128xbf16, #tpu.memory_space<vmem>>, vector<16x128xbf16>,
    return
  }
  func.func @transform_0(%arg0: i32) -> (i32, i32) {
    %c0_i32 = arith.constant 0 : i32
    %c0_i32_0 = arith.constant 0 : i32
    return %arg0, %c0_i32 : i32, i32
  }
  func.func @transform_1(%arg0: i32) -> (i32, i32) {
    %c0_i32 = arith.constant 0 : i32
    %c0_i32_0 = arith.constant 0 : i32
    %c0_i32_1 = arith.constant 0 : i32
    return %c0_i32, %c0_i32_0 : i32, i32
  }
  func.func @transform_2(%arg0: i32) -> (i32, i32) {
    %c0_i32 = arith.constant 0 : i32
    %c0_i32_0 = arith.constant 0 : i32
    %c0_i32_1 = arith.constant 0 : i32
    return %c0_i32, %c0_i32_0 : i32, i32
  }
  func.func @transform_3(%arg0: i32) -> (i32, i32) {
    %c0_i32 = arith.constant 0 : i32
    %c0_i32_0 = arith.constant 0 : i32
    %c0_i32_1 = arith.constant 0 : i32
    return %c0_i32, %c0_i32_0 : i32, i32
  }
  func.func @transform_4(%arg0: i32) -> (i32, i32) {
    %c0_i32 = arith.constant 0 : i32
    %c0_i32_0 = arith.constant 0 : i32
    return %arg0, %c0_i32 : i32, i32
  }
}

</mosaic_0001>

<llo_original>
// kernel: tpu_custom_call.1
$region0: #{tpu_custom_call.1}
  #allocation0 [shape = 'u32[]', space=smem, size = 0x4, offset = 0x4, fixed_abs, tag = 'smem constant byte address 0x4 - core index']
  #allocation1 [shape = 'u32[72,128]{1,0:T(1,128)}', space=vmem, size = 0x9000, scoped, tag = 'internal scratch']
  %s0 = inlined_call_operand.vmem [shape: s32[16,1], index: 0, kind: input, shape index: {}]
  %s1 = inlined_call_operand.hbm [shape: bf16[512,128], index: 1, kind: input, shape index: {}]
  %s2 = inlined_call_operand.hbm [shape: bf16[128,128], index: 2, kind: input, shape index: {}]
  %s3 = inlined_call_operand.vmem [shape: f32[1,128], index: 3, kind: input, shape index: {}]
  %s4 = inlined_call_operand.hbm [shape: bf16[16,128], index: 4, kind: output, shape index: {}]
  %s5 = sld [smem:[#allocation0]]
  $region34: #{tpu_custom_call.1} parent=0
    _
  %s7 = ssub.s32 1, %s5
  %s8 = scalar_select 0, %s7, %s5
  $region1: #{tpu_custom_call.1} parent=0
    #allocation2 [shape = 'u8[131072]{0}', space=vmem, size = 0x20000, scoped, tag = 'input window, operand 1, single buffered']
    #allocation3 [shape = 's32[1]{0}', space=sflag, size = 0x4, scoped, tag = 'scoped memory for tpu_custom_call.1']
    #allocation4 [shape = 's32[1]{0}', space=sflag, size = 0x4, scoped, tag = 'scoped memory for tpu_custom_call.1']
    #allocation5 [shape = 'u8[32768]{0}', space=vmem, size = 0x8000, scoped, tag = 'input window, operand 2, single buffered']
    #allocation6 [shape = 's32[1]{0}', space=sflag, size = 0x4, scoped, tag = 'scoped memory for tpu_custom_call.1']
    #allocation7 [shape = 'u8[4096]{0}', space=vmem, size = 0x1000, scoped, tag = 'output window, operand 0, single buffered']
    %9 = vsyncpa [#allocation3], 0
    %10 = vsyncpa [#allocation6], 0
    %11 = vsyncpa [#allocation4], 0
    // Predicated region
    $region2: #{tpu_custom_call.1} parent=1 // pred_check
      _
    $region3: #{tpu_custom_call.1} parent=1 // pred_check_branch
      %13 = sbr.rel (0) target = $region5
    $region4: #{tpu_custom_call.1} parent=1 // pred_region
      _
    $region5: #{tpu_custom_call.1} parent=1 // pred_fallthru
      _
    // Predicated region
    $region6: #{tpu_custom_call.1} parent=1 // pred_check
      _
    $region7: #{tpu_custom_call.1} parent=1 // pred_check_branch
      %15 = sbr.rel (0) target = $region9
    $region8: #{tpu_custom_call.1} parent=1 // pred_region
      %17 = vsyncadd [#allocation3], 0
      %s18 = sshll.u32 %s1, 4
      %s19 = int_to_ptr.hbm [resolvable:$true] %s18
      %s20 = sshll.u32 [#allocation2], 4
      %s21 = int_to_ptr.vmem [resolvable:$true] %s20
      %26 = dma.hbm_to_vmem [thread:$0]  %s19, 4096, %s21, [#allocation3], 64, 64, 4
    $region9: #{tpu_custom_call.1} parent=1 // pred_fallthru
      _
    // Predicated region
    $region10: #{tpu_custom_call.1} parent=1 // pred_check
      _
    $region11: #{tpu_custom_call.1} parent=1 // pred_check_branch
      %28 = sbr.rel (0) target = $region13
    $region12: #{tpu_custom_call.1} parent=1 // pred_region
      %30 = vsyncadd [#allocation6], 0
      %s31 = sshll.u32 %s2, 4
      %s32 = int_to_ptr.hbm [resolvable:$true] %s31
      %s33 = sshll.u32 [#allocation5], 4
      %s34 = int_to_ptr.vmem [resolvable:$true] %s33
      %39 = dma.hbm_to_vmem [thread:$0]  %s32, 1024, %s34, [#allocation6], 64, 64, 4
    $region13: #{tpu_custom_call.1} parent=1 // pred_fallthru
      _
    // Predicated region
    $region14: #{tpu_custom_call.1} parent=1 // pred_check
      _
    $region15: #{tpu_custom_call.1} parent=1 // pred_check_branch
      %41 = sbr.rel (0) target = $region17
    $region16: #{tpu_custom_call.1} parent=1 // pred_region
      _
    $region17: #{tpu_custom_call.1} parent=1 // pred_fallthru
      _
    // Predicated region
    $region18: #{tpu_custom_call.1} parent=1 // pred_check
      _
    $region19: #{tpu_custom_call.1} parent=1 // pred_check_branch
      %43 = sbr.rel (0) target = $region21
    $region20: #{tpu_custom_call.1} parent=1 // pred_region
      %45 = dma.done [#allocation3], 4096
    $region21: #{tpu_custom_call.1} parent=1 // pred_fallthru
      _
    // Predicated region
    $region22: #{tpu_custom_call.1} parent=1 // pred_check
      _
    $region23: #{tpu_custom_call.1} parent=1 // pred_check_branch
      %47 = sbr.rel (0) target = $region25
    $region24: #{tpu_custom_call.1} parent=1 // pred_region
      %49 = dma.done [#allocation6], 1024
    $region25: #{tpu_custom_call.1} parent=1 // pred_fallthru
      _
    %v50 = vld [vmem:[%s0] sm:$0xff]
    %v51 = vld [vmem:[%s0 + $0x8] sm:$0xff]
    %v52 = vlaneseq
    %v53 = vand.u32 %v52, 127
    %v54 = vadd.s32 %v53, 128
    %v55 = vadd.s32 %v53, 256
    %v56 = vadd.s32 %v53, 384
    %57 = vset.pattern.permute.xlu0 0
    %58 = vperm.xlu0 %57, %v50
    %v59 = vpop.permute.xlu0 %58
    %60 = vset.pattern.permute.xlu0 0
    %61 = vperm.xlu0 %60, %v51
    %v62 = vpop.permute.xlu0 %61
    %vm63 = vcmp.eq.s32.totalorder %v53, %v59
    %vm64 = vcmp.eq.s32.totalorder %v54, %v59
    %vm65 = vcmp.eq.s32.totalorder %v55, %v59
    %vm66 = vcmp.eq.s32.totalorder %v56, %v59
    %vm67 = vcmp.eq.s32.totalorder %v53, %v62
    %vm68 = vcmp.eq.s32.totalorder %v54, %v62
    %vm69 = vcmp.eq.s32.totalorder %v55, %v62
    %vm70 = vcmp.eq.s32.totalorder %v56, %v62
    %v71 = vsel %vm63, 1.0, 0.0
    %v72 = vsel %vm64, 1.0, 0.0
    %v73 = vsel %vm65, 1.0, 0.0
    %v74 = vsel %vm66, 1.0, 0.0
    %v75 = vsel %vm67, 1.0, 0.0
    %v76 = vsel %vm68, 1.0, 0.0
    %v77 = vsel %vm69, 1.0, 0.0
    %v78 = vsel %vm70, 1.0, 0.0
    %v79 = vpack.c.bf16 %v75, %v71
    %v80 = vpack.c.bf16 %v76, %v72
    %v81 = vpack.c.bf16 %v77, %v73
    %v82 = vpack.c.bf16 %v78, %v74
    %v83 = vld [vmem:[#allocation2] sm:$0xf]
    %v84 = vld [vmem:[#allocation2 + $0x4] sm:$0xf]
    %v85 = vld [vmem:[#allocation2 + $0x8] sm:$0xf]
    %v86 = vld [vmem:[#allocation2 + $0xc] sm:$0xf]
    %v87 = vld [vmem:[#allocation2 + $0x10] sm:$0xf]
    %v88 = vld [vmem:[#allocation2 + $0x14] sm:$0xf]
    %v89 = vld [vmem:[#allocation2 + $0x18] sm:$0xf]
    %v90 = vld [vmem:[#allocation2 + $0x1c] sm:$0xf]
    %v91 = vld [vmem:[#allocation2 + $0x20] sm:$0xf]
    %v92 = vld [vmem:[#allocation2 + $0x24] sm:$0xf]
    %v93 = vld [vmem:[#allocation2 + $0x28] sm:$0xf]
    %v94 = vld [vmem:[#allocation2 + $0x2c] sm:$0xf]
    %v95 = vld [vmem:[#allocation2 + $0x30] sm:$0xf]
    %v96 = vld [vmem:[#allocation2 + $0x34] sm:$0xf]
    %v97 = vld [vmem:[#allocation2 + $0x38] sm:$0xf]
    %v98 = vld [vmem:[#allocation2 + $0x3c] sm:$0xf]
    %v99 = vld [vmem:[#allocation2 + $0x40] sm:$0xf]
    %v100 = vld [vmem:[#allocation2 + $0x44] sm:$0xf]
    %v101 = vld [vmem:[#allocation2 + $0x48] sm:$0xf]
    %v102 = vld [vmem:[#allocation2 + $0x4c] sm:$0xf]
    %v103 = vld [vmem:[#allocation2 + $0x50] sm:$0xf]
    %v104 = vld [vmem:[#allocation2 + $0x54] sm:$0xf]
    %v105 = vld [vmem:[#allocation2 + $0x58] sm:$0xf]
    %v106 = vld [vmem:[#allocation2 + $0x5c] sm:$0xf]
    %v107 = vld [vmem:[#allocation2 + $0x60] sm:$0xf]
    %v108 = vld [vmem:[#allocation2 + $0x64] sm:$0xf]
    %v109 = vld [vmem:[#allocation2 + $0x68] sm:$0xf]
    %v110 = vld [vmem:[#allocation2 + $0x6c] sm:$0xf]
    %v111 = vld [vmem:[#allocation2 + $0x70] sm:$0xf]
    %v112 = vld [vmem:[#allocation2 + $0x74] sm:$0xf]
    %v113 = vld [vmem:[#allocation2 + $0x78] sm:$0xf]
    %v114 = vld [vmem:[#allocation2 + $0x7c] sm:$0xf]
    %v115 = vld [vmem:[#allocation2 + $0x80] sm:$0xf]
    %v116 = vld [vmem:[#allocation2 + $0x84] sm:$0xf]
    %v117 = vld [vmem:[#allocation2 + $0x88] sm:$0xf]
    %v118 = vld [vmem:[#allocation2 + $0x8c] sm:$0xf]
    %v119 = vld [vmem:[#allocation2 + $0x90] sm:$0xf]
    %v120 = vld [vmem:[#allocation2 + $0x94] sm:$0xf]
    %v121 = vld [vmem:[#allocation2 + $0x98] sm:$0xf]
    %v122 = vld [vmem:[#allocation2 + $0x9c] sm:$0xf]
    %v123 = vld [vmem:[#allocation2 + $0xa0] sm:$0xf]
    %v124 = vld [vmem:[#allocation2 + $0xa4] sm:$0xf]
    %v125 = vld [vmem:[#allocation2 + $0xa8] sm:$0xf]
    %v126 = vld [vmem:[#allocation2 + $0xac] sm:$0xf]
    %v127 = vld [vmem:[#allocation2 + $0xb0] sm:$0xf]
    %v128 = vld [vmem:[#allocation2 + $0xb4] sm:$0xf]
    %v129 = vld [vmem:[#allocation2 + $0xb8] sm:$0xf]
    %v130 = vld [vmem:[#allocation2 + $0xbc] sm:$0xf]
    %v131 = vld [vmem:[#allocation2 + $0xc0] sm:$0xf]
    %v132 = vld [vmem:[#allocation2 + $0xc4] sm:$0xf]
    %v133 = vld [vmem:[#allocation2 + $0xc8] sm:$0xf]
    %v134 = vld [vmem:[#allocation2 + $0xcc] sm:$0xf]
    %v135 = vld [vmem:[#allocation2 + $0xd0] sm:$0xf]
    %v136 = vld [vmem:[#allocation2 + $0xd4] sm:$0xf]
    %v137 = vld [vmem:[#allocation2 + $0xd8] sm:$0xf]
    %v138 = vld [vmem:[#allocation2 + $0xdc] sm:$0xf]
    %v139 = vld [vmem:[#allocation2 + $0xe0] sm:$0xf]
    %v140 = vld [vmem:[#allocation2 + $0xe4] sm:$0xf]
    %v141 = vld [vmem:[#allocation2 + $0xe8] sm:$0xf]
    %v142 = vld [vmem:[#allocation2 + $0xec] sm:$0xf]
    %v143 = vld [vmem:[#allocation2 + $0xf0] sm:$0xf]
    %v144 = vld [vmem:[#allocation2 + $0xf4] sm:$0xf]
    %v145 = vld [vmem:[#allocation2 + $0xf8] sm:$0xf]
    %v146 = vld [vmem:[#allocation2 + $0xfc] sm:$0xf]
    %v211 = vunpack.c.l.b16 %v83
    %v212 = vunpack.c.l.b16 %v84
    %v213 = vunpack.c.l.b16 %v85
    %v214 = vunpack.c.l.b16 %v86
    %v215 = vunpack.c.l.b16 %v87
    %v216 = vunpack.c.l.b16 %v88
    %v217 = vunpack.c.l.b16 %v89
    %v218 = vunpack.c.l.b16 %v90
    %v219 = vunpack.c.l.b16 %v91
    %v220 = vunpack.c.l.b16 %v92
    %v221 = vunpack.c.l.b16 %v93
    %v222 = vunpack.c.l.b16 %v94
    %v223 = vunpack.c.l.b16 %v95
    %v224 = vunpack.c.l.b16 %v96
    %v225 = vunpack.c.l.b16 %v97
    %v226 = vunpack.c.l.b16 %v98
    %v227 = vunpack.c.l.b16 %v99
    %v228 = vunpack.c.l.b16 %v100
    %v229 = vunpack.c.l.b16 %v101
    %v230 = vunpack.c.l.b16 %v102
    %v231 = vunpack.c.l.b16 %v103
    %v232 = vunpack.c.l.b16 %v104
    %v233 = vunpack.c.l.b16 %v105
    %v234 = vunpack.c.l.b16 %v106
    %v235 = vunpack.c.l.b16 %v107
    %v236 = vunpack.c.l.b16 %v108
    %v237 = vunpack.c.l.b16 %v109
    %v238 = vunpack.c.l.b16 %v110
    %v239 = vunpack.c.l.b16 %v111
    %v240 = vunpack.c.l.b16 %v112
    %v241 = vunpack.c.l.b16 %v113
    %v242 = vunpack.c.l.b16 %v114
    %v243 = vunpack.c.l.b16 %v115
    %v244 = vunpack.c.l.b16 %v116
    %v245 = vunpack.c.l.b16 %v117
    %v246 = vunpack.c.l.b16 %v118
    %v247 = vunpack.c.l.b16 %v119
    %v248 = vunpack.c.l.b16 %v120
    %v249 = vunpack.c.l.b16 %v121
    %v250 = vunpack.c.l.b16 %v122
    %v251 = vunpack.c.l.b16 %v123
    %v252 = vunpack.c.l.b16 %v124
    %v253 = vunpack.c.l.b16 %v125
    %v254 = vunpack.c.l.b16 %v126
    %v255 = vunpack.c.l.b16 %v127
    %v256 = vunpack.c.l.b16 %v128
    %v257 = vunpack.c.l.b16 %v129
    %v258 = vunpack.c.l.b16 %v130
    %v259 = vunpack.c.l.b16 %v131
    %v260 = vunpack.c.l.b16 %v132
    %v261 = vunpack.c.l.b16 %v133
    %v262 = vunpack.c.l.b16 %v134
    %v263 = vunpack.c.l.b16 %v135
    %v264 = vunpack.c.l.b16 %v136
    %v265 = vunpack.c.l.b16 %v137
    %v266 = vunpack.c.l.b16 %v138
    %v267 = vunpack.c.l.b16 %v139
    %v268 = vunpack.c.l.b16 %v140
    %v269 = vunpack.c.l.b16 %v141
    %v270 = vunpack.c.l.b16 %v142
    %v271 = vunpack.c.l.b16 %v143
    %v272 = vunpack.c.l.b16 %v144
    %v273 = vunpack.c.l.b16 %v145
    %v274 = vunpack.c.l.b16 %v146
    %v275 = vpack.c.b16 %v212, %v211
    %v276 = vpack.c.b16 %v214, %v213
    %v277 = vpack.c.b16 %v216, %v215
    %v278 = vpack.c.b16 %v218, %v217
    %v279 = vpack.c.b16 %v220, %v219
    %v280 = vpack.c.b16 %v222, %v221
    %v281 = vpack.c.b16 %v224, %v223
    %v282 = vpack.c.b16 %v226, %v225
    %v283 = vpack.c.b16 %v228, %v227
    %v284 = vpack.c.b16 %v230, %v229
    %v285 = vpack.c.b16 %v232, %v231
    %v286 = vpack.c.b16 %v234, %v233
    %v287 = vpack.c.b16 %v236, %v235
    %v288 = vpack.c.b16 %v238, %v237
    %v289 = vpack.c.b16 %v240, %v239
    %v290 = vpack.c.b16 %v242, %v241
    %v291 = vpack.c.b16 %v244, %v243
    %v292 = vpack.c.b16 %v246, %v245
    %v293 = vpack.c.b16 %v248, %v247
    %v294 = vpack.c.b16 %v250, %v249
    %v295 = vpack.c.b16 %v252, %v251
    %v296 = vpack.c.b16 %v254, %v253
    %v297 = vpack.c.b16 %v256, %v255
    %v298 = vpack.c.b16 %v258, %v257
    %v299 = vpack.c.b16 %v260, %v259
    %v300 = vpack.c.b16 %v262, %v261
    %v301 = vpack.c.b16 %v264, %v263
    %v302 = vpack.c.b16 %v266, %v265
    %v303 = vpack.c.b16 %v268, %v267
    %v304 = vpack.c.b16 %v270, %v269
    %v305 = vpack.c.b16 %v272, %v271
    %v306 = vpack.c.b16 %v274, %v273
    %339 = vmatpush.bf16.msra.mxu0 %v282
    %340 = vmatpush.bf16.msra.mxu0 %v281
    %341 = vmatpush.bf16.msra.mxu0 %v280
    %342 = vmatpush.bf16.msra.mxu0 %v279
    %343 = vmatpush.bf16.msra.mxu0 %v278
    %344 = vmatpush.bf16.msra.mxu0 %v277
    %345 = vmatpush.bf16.msra.mxu0 %v276
    %346 = vmatpush.bf16.msra.mxu0 %v275
    %347 = vmatmul.bf16.gmra.mxu0 %v79
    %v348 = vpop.f32.mrf.mxu0
    %v349 = vadd.f32 0.0, %v348
    %v350 = vpop.f32.mrf.mxu0
    %v351 = vadd.f32 0.0, %v350
    %352 = vdwg.mxu0
    %353 = vmatpush.bf16.msra.mxu0 %v290
    %354 = vmatpush.bf16.msra.mxu0 %v289
    %355 = vmatpush.bf16.msra.mxu0 %v288
    %356 = vmatpush.bf16.msra.mxu0 %v287
    %357 = vmatpush.bf16.msra.mxu0 %v286
    %358 = vmatpush.bf16.msra.mxu0 %v285
    %359 = vmatpush.bf16.msra.mxu0 %v284
    %360 = vmatpush.bf16.msra.mxu0 %v283
    %361 = vmatmul.bf16.gmra.mxu0 %v80
    %v362 = vpop.f32.mrf.mxu0
    %v363 = vadd.f32 %v349, %v362
    %v364 = vpop.f32.mrf.mxu0
    %v365 = vadd.f32 %v351, %v364
    %366 = vdwg.mxu0
    %367 = vmatpush.bf16.msra.mxu0 %v298
    %368 = vmatpush.bf16.msra.mxu0 %v297
    %369 = vmatpush.bf16.msra.mxu0 %v296
    %370 = vmatpush.bf16.msra.mxu0 %v295
    %371 = vmatpush.bf16.msra.mxu0 %v294
    %372 = vmatpush.bf16.msra.mxu0 %v293
    %373 = vmatpush.bf16.msra.mxu0 %v292
    %374 = vmatpush.bf16.msra.mxu0 %v291
    %375 = vmatmul.bf16.gmra.mxu0 %v81
    %v376 = vpop.f32.mrf.mxu0
    %v377 = vadd.f32 %v363, %v376
    %v378 = vpop.f32.mrf.mxu0
    %v379 = vadd.f32 %v365, %v378
    %380 = vdwg.mxu0
    %381 = vmatpush.bf16.msra.mxu0 %v306
    %382 = vmatpush.bf16.msra.mxu0 %v305
    %383 = vmatpush.bf16.msra.mxu0 %v304
    %384 = vmatpush.bf16.msra.mxu0 %v303
    %385 = vmatpush.bf16.msra.mxu0 %v302
    %386 = vmatpush.bf16.msra.mxu0 %v301
    %387 = vmatpush.bf16.msra.mxu0 %v300
    %388 = vmatpush.bf16.msra.mxu0 %v299
    %389 = vmatmul.bf16.gmra.mxu0 %v82
    %v390 = vpop.f32.mrf.mxu0
    %v391 = vadd.f32 %v377, %v390
    %v392 = vpop.f32.mrf.mxu0
    %v393 = vadd.f32 %v379, %v392
    %394 = vdwg.mxu0
    %v395 = vpack.c.bf16 %v393, %v391
    %v396 = vld [vmem:[#allocation5] sm:$0xf]
    %v397 = vld [vmem:[#allocation5 + $0x4] sm:$0xf]
    %v398 = vld [vmem:[#allocation5 + $0x8] sm:$0xf]
    %v399 = vld [vmem:[#allocation5 + $0xc] sm:$0xf]
    %v400 = vld [vmem:[#allocation5 + $0x10] sm:$0xf]
    %v401 = vld [vmem:[#allocation5 + $0x14] sm:$0xf]
    %v402 = vld [vmem:[#allocation5 + $0x18] sm:$0xf]
    %v403 = vld [vmem:[#allocation5 + $0x1c] sm:$0xf]
    %v404 = vld [vmem:[#allocation5 + $0x20] sm:$0xf]
    %v405 = vld [vmem:[#allocation5 + $0x24] sm:$0xf]
    %v406 = vld [vmem:[#allocation5 + $0x28] sm:$0xf]
    %v407 = vld [vmem:[#allocation5 + $0x2c] sm:$0xf]
    %v408 = vld [vmem:[#allocation5 + $0x30] sm:$0xf]
    %v409 = vld [vmem:[#allocation5 + $0x34] sm:$0xf]
    %v410 = vld [vmem:[#allocation5 + $0x38] sm:$0xf]
    %v411 = vld [vmem:[#allocation5 + $0x3c] sm:$0xf]
    %v412 = vld [vmem:[%s3] sm:$0x1]
    %v414 = vperm.slane %v412, 0
    %v432 = vunpack.c.l.b16 %v396
    %v433 = vunpack.c.l.b16 %v397
    %v434 = vunpack.c.l.b16 %v398
    %v435 = vunpack.c.l.b16 %v399
    %v436 = vunpack.c.l.b16 %v400
    %v437 = vunpack.c.l.b16 %v401
    %v438 = vunpack.c.l.b16 %v402
    %v439 = vunpack.c.l.b16 %v403
    %v440 = vunpack.c.l.b16 %v404
    %v441 = vunpack.c.l.b16 %v405
    %v442 = vunpack.c.l.b16 %v406
    %v443 = vunpack.c.l.b16 %v407
    %v444 = vunpack.c.l.b16 %v408
    %v445 = vunpack.c.l.b16 %v409
    %v446 = vunpack.c.l.b16 %v410
    %v447 = vunpack.c.l.b16 %v411
    %v448 = vpack.c.b16 %v433, %v432
    %v449 = vpack.c.b16 %v435, %v434
    %v450 = vpack.c.b16 %v437, %v436
    %v451 = vpack.c.b16 %v439, %v438
    %v452 = vpack.c.b16 %v441, %v440
    %v453 = vpack.c.b16 %v443, %v442
    %v454 = vpack.c.b16 %v445, %v444
    %v455 = vpack.c.b16 %v447, %v446
    %464 = vmatpush.bf16.msra.mxu0 %v455
    %465 = vmatpush.bf16.msra.mxu0 %v454
    %466 = vmatpush.bf16.msra.mxu0 %v453
    %467 = vmatpush.bf16.msra.mxu0 %v452
    %468 = vmatpush.bf16.msra.mxu0 %v451
    %469 = vmatpush.bf16.msra.mxu0 %v450
    %470 = vmatpush.bf16.msra.mxu0 %v449
    %471 = vmatpush.bf16.msra.mxu0 %v448
    %472 = vmatmul.bf16.gmra.mxu0 %v395
    %v473 = vpop.f32.mrf.mxu0
    %v474 = vadd.f32 %v414, %v473
    %v475 = vpop.f32.mrf.mxu0
    %v476 = vadd.f32 %v414, %v475
    %477 = vdwg.mxu0
    %v478 = vmax.f32 %v474, 0.0
    %v479 = vmax.f32 %v476, 0.0
    %v480 = vpack.c.bf16 %v478, %v478
    %v481 = vpack.c.bf16 %v479, %v479
    %482 = vst [vmem:[#allocation7] sm:$0xf] %v480
    %483 = vst [vmem:[#allocation7 + $0x4] sm:$0xf] %v481
    // Predicated region
    $region26: #{tpu_custom_call.1} parent=1 // pred_check
      _
    $region27: #{tpu_custom_call.1} parent=1 // pred_check_branch
      %485 = sbr.rel (0) target = $region29
    $region28: #{tpu_custom_call.1} parent=1 // pred_region
      %487 = vsyncadd [#allocation4], 0
      %s488 = sshll.u32 [#allocation7], 4
      %s489 = int_to_ptr.vmem [resolvable:$true] %s488
      %s490 = sshll.u32 %s4, 4
      %s491 = int_to_ptr.hbm [resolvable:$true] %s490
      %496 = dma.vmem_to_hbm [thread:$0]  %s489, 128, %s491, [#allocation4], 64, 64, 4
    $region29: #{tpu_custom_call.1} parent=1 // pred_fallthru
      _
    // Predicated region
    $region30: #{tpu_custom_call.1} parent=1 // pred_check
      _
    $region31: #{tpu_custom_call.1} parent=1 // pred_check_branch
      %498 = sbr.rel (0) target = $region33
    $region32: #{tpu_custom_call.1} parent=1 // pred_region
      %500 = dma.done [#allocation4], 128
    $region33: #{tpu_custom_call.1} parent=1 // pred_fallthru
      _
    %501 = vsyncpa [#allocation3], 1
    %502 = vsyncpa [#allocation6], 1
    %503 = vsyncpa [#allocation4], 1

</llo_original>
